<compile_context>
chip_gen: v5e
topology: v5e:2x2
jax: 0.10.0
libtpu: 0.0.40
codegen_flags: <defaults>
</compile_context>

<pallas_src>
import functools

import jax
import jax.numpy as jnp
from jax.experimental import pallas as pl
from jax.experimental.pallas import tpu as pltpu


def _round_up(x, m):
    return ((x + m - 1) // m) * m


def _actor_kernel(obs_ref, w_ref, b_ref, out_ref, *,
                  dim_obs, h1n, h2n, a_pad, r2, r3, c2, c3):
    # obs arrives in f32; cast to bf16 in-kernel (VPU, hidden under the DMA
    # pipeline) so no separate XLA cast pass over obs is needed.
    obs = obs_ref[...].astype(jnp.bfloat16)

    # Static slices of the packed parameter slabs.  Row offsets are multiples
    # of 16 (bf16 packs 2 rows/sublane) and lane offsets are multiples of 128,
    # so these are plain (possibly masked) vlds with no relayout.
    w1 = w_ref[0:dim_obs, 0:h1n]            # (dim_obs, h1n)  bf16
    w2 = w_ref[r2:r2 + h1n, 0:h2n]          # (h1n, h2n)      bf16
    w3 = w_ref[r3:r3 + h2n, 0:a_pad]        # (h2n, a_pad)    bf16
    b1 = b_ref[0:1, 0:h1n]                  # (1, h1n)        f32
    b2 = b_ref[0:1, c2:c2 + h2n]            # (1, h2n)        f32
    b3 = b_ref[0:1, c3:c3 + a_pad]          # (1, a_pad)      f32

    # FC1 + ReLU, FC2 + ReLU (bf16 MXU operands, f32 accumulation; ReLU/add
    # on the VPU in f32).
    h1 = jnp.dot(obs, w1, preferred_element_type=jnp.float32)
    h1 = jnp.maximum(h1 + b1, 0.0)
    h2 = jnp.dot(h1.astype(jnp.bfloat16), w2, preferred_element_type=jnp.float32)
    h2 = jnp.maximum(h2 + b2, 0.0)

    # FC3 -> (tile_b, a_pad); transpose (small XLU step over 8 lanes) so the
    # output store is lane-dense over the batch axis and HBM writeback is only
    # a_pad * 4 bytes per batch row.  tanh (EUP) runs post-transpose on fully
    # packed vregs.
    h3 = jnp.dot(h2.astype(jnp.bfloat16), w3, preferred_element_type=jnp.float32)
    h3 = h3 + b3                             # (tile_b, a_pad) f32
    out_ref[...] = jnp.tanh(h3.T).astype(out_ref.dtype)   # (a_pad, tile_b)


def pack_actor_params(params):
    """One-time prep: fuse the 6 weight/bias tensors into 2 DMA operands."""
    w1, w2, w3 = params["w1"], params["w2"], params["w3"]
    b1, b2, b3 = params["b1"], params["b2"], params["b3"]
    dim_obs, h1n = w1.shape
    h2n = w2.shape[1]
    dim_action = w3.shape[1]
    a_pad = _round_up(dim_action, 8)         # action dim -> >= 8 sublanes

    # Weight slab (bf16): one 128-lane panel, blocks stacked on 16-row
    # boundaries.  Zero padding is benign (padded rows/cols contribute 0).
    r2 = _round_up(dim_obs, 16)
    r3 = r2 + _round_up(h1n, 16)
    n_rows = r3 + _round_up(h2n, 16)
    n_cols = _round_up(max(h1n, h2n, a_pad), 128)
    wslab = jnp.zeros((n_rows, n_cols), jnp.float32)
    wslab = wslab.at[0:dim_obs, 0:h1n].set(w1)
    wslab = wslab.at[r2:r2 + h1n, 0:h2n].set(w2)
    wslab = wslab.at[r3:r3 + h2n, 0:dim_action].set(w3)
    wslab = wslab.astype(jnp.bfloat16)

    # Bias slab (f32): one row, each bias in its own 128-lane panel.
    c2 = _round_up(h1n, 128)
    c3 = c2 + _round_up(h2n, 128)
    n_bcols = c3 + _round_up(a_pad, 128)
    bslab = jnp.zeros((1, n_bcols), jnp.float32)
    bslab = bslab.at[:, 0:h1n].set(b1.reshape(1, h1n).astype(jnp.float32))
    bslab = bslab.at[:, c2:c2 + h2n].set(b2.reshape(1, h2n).astype(jnp.float32))
    bslab = bslab.at[:, c3:c3 + dim_action].set(
        b3.reshape(1, dim_action).astype(jnp.float32))

    meta = dict(dim_obs=dim_obs, h1n=h1n, h2n=h2n, dim_action=dim_action,
                a_pad=a_pad, r2=r2, r3=r3, c2=c2, c3=c3)
    return {"wslab": wslab, "bslab": bslab, "meta": meta}


def _pick_tile_b(B, max_tile_b):
    """Batch tile: single 16-row-rounded tile for small B; otherwise 128-row
    multiples sized for >= 2 grid steps (>= 4 for large B) so the output
    writeback / obs prefetch pipeline and v7x megacore both engage."""
    if B <= 256:
        return _round_up(max(B, 1), 16)
    n_steps = 4 if B >= 1024 else 2
    tile = _round_up(pl.cdiv(B, n_steps), 128)
    return min(max(tile, 128), max_tile_b)


def actor_forward(obs, packed, *, max_tile_b=2048):
    """obs: (B, dim_observation) float32. packed: output of pack_actor_params."""
    meta = packed["meta"]
    B, dim_obs = obs.shape
    assert dim_obs == meta["dim_obs"]
    a_pad = meta["a_pad"]
    dim_action = meta["dim_action"]

    tile_b = _pick_tile_b(B, max_tile_b)
    b_pad = _round_up(B, tile_b)
    obs_p = obs if b_pad == B else jnp.pad(obs, ((0, b_pad - B), (0, 0)))

    wslab, bslab = packed["wslab"], packed["bslab"]
    grid = (b_pad // tile_b,)

    kernel = functools.partial(
        _actor_kernel,
        dim_obs=dim_obs, h1n=meta["h1n"], h2n=meta["h2n"], a_pad=a_pad,
        r2=meta["r2"], r3=meta["r3"], c2=meta["c2"], c3=meta["c3"])

    out_t = pl.pallas_call(
        kernel,
        out_shape=jax.ShapeDtypeStruct((a_pad, b_pad), jnp.float32),
        grid=grid,
        in_specs=[
            pl.BlockSpec((tile_b, dim_obs), lambda i: (i, 0)),   # streamed obs (f32)
            pl.BlockSpec(wslab.shape, lambda i: (0, 0)),         # VMEM-resident weights
            pl.BlockSpec(bslab.shape, lambda i: (0, 0)),         # VMEM-resident biases
        ],
        # Transposed output: block last dim = tile_b (multiple of 128 on the
        # multi-step path) -> unmasked lane-dense stores, tiny HBM writeback.
        out_specs=pl.BlockSpec((a_pad, tile_b), lambda i: (0, i)),
        compiler_params=pltpu.CompilerParams(
            # Batch axis split across v7x's two TensorCores; harmless on v5e/v6e.
            dimension_semantics=("parallel",),
        ),
    )(obs_p, wslab, bslab)

    return out_t[:dim_action, :B].T


def init_actor_params(key, dim_observation, dim_action,
                      fc_units_1=64, fc_units_2=32, init_w=0.003):
    """Deterministic init matching the PyTorch module's init_weights scheme.

    fanin_init: U(-1/sqrt(size[0]), 1/sqrt(size[0])) on the (out, in) weight,
    so size[0] == out_features; replicated exactly here. Biases keep PyTorch's
    default Linear init: U(-1/sqrt(in), 1/sqrt(in)).
    """
    ks = jax.random.split(key, 6)

    def uniform(k, shape, bound):
        return jax.random.uniform(k, shape, jnp.float32, -bound, bound)

    v1 = 1.0 / jnp.sqrt(jnp.float32(fc_units_1))
    v2 = 1.0 / jnp.sqrt(jnp.float32(fc_units_2))

    # Weights stored as (in, out) so the kernel computes x @ W directly.
    w1 = uniform(ks[0], (dim_observation, fc_units_1), v1)
    w2 = uniform(ks[1], (fc_units_1, fc_units_2), v2)
    w3 = uniform(ks[2], (fc_units_2, dim_action), jnp.float32(init_w))

    b1 = uniform(ks[3], (1, fc_units_1), 1.0 / jnp.sqrt(jnp.float32(dim_observation)))
    b2 = uniform(ks[4], (1, fc_units_2), 1.0 / jnp.sqrt(jnp.float32(fc_units_1)))
    b3 = uniform(ks[5], (1, dim_action), 1.0 / jnp.sqrt(jnp.float32(fc_units_2)))

    return {"w1": w1, "b1": b1, "w2": w2, "b2": b2, "w3": w3, "b3": b3}


def _reference(obs, params):
    h1 = jnp.maximum(obs @ params["w1"] + params["b1"], 0.0)
    h2 = jnp.maximum(h1 @ params["w2"] + params["b2"], 0.0)
    return jnp.tanh(h2 @ params["w3"] + params["b3"])


if __name__ == "__main__":
    key = jax.random.PRNGKey(0)
    k_obs, k_obs2, k_obs3, k_params = jax.random.split(key, 4)

    dim_observation = 16
    dim_action = 4
    params = init_actor_params(k_params, dim_observation, dim_action)
    packed = pack_actor_params(params)   # pack weights/biases once

    # Small case (typical per-step RL actor call): single-tile latency path.
    B = 2
    obs = jax.random.normal(k_obs, (B, dim_observation), jnp.float32)
    out = jax.block_until_ready(actor_forward(obs, packed))
    ref = _reference(obs, params)
    assert out.shape == (B, dim_action)
    # bf16 matmul operands -> loosened tolerance vs f32 reference.
    assert jnp.allclose(out, ref, atol=2e-2, rtol=2e-2)

    # Medium, non-multiple batch -> 2 pipelined grid steps with batch padding.
    B2 = 300
    obs2 = jax.random.normal(k_obs2, (B2, dim_observation), jnp.float32)
    out2 = jax.block_until_ready(actor_forward(obs2, packed))
    ref2 = _reference(obs2, params)
    assert out2.shape == (B2, dim_action)
    assert jnp.allclose(out2, ref2, atol=2e-2, rtol=2e-2)

    # Large batch -> 4 grid steps (pipelining + v7x megacore sharding).
    B3 = 1536
    obs3 = jax.random.normal(k_obs3, (B3, dim_observation), jnp.float32)
    out3 = jax.block_until_ready(actor_forward(obs3, packed))
    ref3 = _reference(obs3, params)
    assert out3.shape == (B3, dim_action)
    assert jnp.allclose(out3, ref3, atol=2e-2, rtol=2e-2)

    print("KERNEL_OK")
</pallas_src>

<mosaic_0001>
module attributes {stable_mosaic.version = 11 : i64} {
  func.func @_actor_kernel(%arg0: i32, %arg1: memref<16x16xf32, #tpu.memory_space<vmem>>, %arg2: memref<112x128xbf16, #tpu.memory_space<vmem>>, %arg3: memref<1x384xf32, #tpu.memory_space<vmem>>, %arg4: memref<8x16xf32, #tpu.memory_space<vmem>>) attributes {dimension_semantics = [#tpu.dimension_semantics<parallel>], iteration_bounds = array<i64: 1>, scalar_prefetch = 0 : i64, scratch_operands = 0 : i64, tpu.core_type = #tpu.core_type<tc>, window_params = [{transform_indices = @transform_0, window_bounds = array<i64: 16, 16>}, {pipeline_mode = #tpu.pipeline_mode<synchronous>, transform_indices = @transform_1, window_bounds = array<i64: 112, 128>}, {pipeline_mode = #tpu.pipeline_mode<synchronous>, transform_indices = @transform_2, window_bounds = array<i64: 1, 384>}, {transform_indices = @transform_3, window_bounds = array<i64: 8, 16>}]} {
    %c0 = arith.constant 0 : index
    %c0_0 = arith.constant 0 : index
    %0 = vector.load %arg1[%c0, %c0_0] : memref<16x16xf32, #tpu.memory_space<vmem>>, vector<16x16xf32>
    %1 = arith.truncf %0 : vector<16x16xf32> to vector<16x16xbf16>
    %c0_1 = arith.constant 0 : index
    %c0_2 = arith.constant 0 : index
    %2 = vector.load %arg2[%c0_1, %c0_2] : memref<112x128xbf16, #tpu.memory_space<vmem>>, vector<16x64xbf16>
    %c16 = arith.constant 16 : index
    %c0_3 = arith.constant 0 : index
    %3 = vector.load %arg2[%c16, %c0_3] : memref<112x128xbf16, #tpu.memory_space<vmem>>, vector<64x32xbf16>
    %c80 = arith.constant 80 : index
    %c0_4 = arith.constant 0 : index
    %4 = vector.load %arg2[%c80, %c0_4] : memref<112x128xbf16, #tpu.memory_space<vmem>>, vector<32x8xbf16>
    %c0_5 = arith.constant 0 : index
    %c0_6 = arith.constant 0 : index
    %5 = vector.load %arg3[%c0_5, %c0_6] : memref<1x384xf32, #tpu.memory_space<vmem>>, vector<1x64xf32>
    %c0_7 = arith.constant 0 : index
    %c128 = arith.constant 128 : index
    %6 = vector.load %arg3[%c0_7, %c128] : memref<1x384xf32, #tpu.memory_space<vmem>>, vector<1x32xf32>
    %c0_8 = arith.constant 0 : index
    %c256 = arith.constant 256 : index
    %7 = vector.load %arg3[%c0_8, %c256] : memref<1x384xf32, #tpu.memory_space<vmem>>, vector<1x8xf32>
    %cst = arith.constant dense<0.000000e+00> : vector<16x64xf32>
    %8 = tpu.matmul %1, %2, %cst {dimension_numbers = #tpu.dot_dimension_numbers<[1], [0], [0], [1], [0, 0, 1, 1], [], []>} : vector<16x16xbf16>, vector<16x64xbf16>, vector<16x64xf32> -> vector<16x64xf32>
    %9 = vector.broadcast %5 : vector<1x64xf32> to vector<16x64xf32>
    %10 = arith.addf %8, %9 : vector<16x64xf32>
    %cst_9 = arith.constant 0.000000e+00 : f32
    %11 = vector.broadcast %cst_9 : f32 to vector<16x64xf32>
    %12 = arith.maximumf %10, %11 : vector<16x64xf32>
    %13 = arith.truncf %12 : vector<16x64xf32> to vector<16x64xbf16>
    %cst_10 = arith.constant dense<0.000000e+00> : vector<16x32xf32>
    %14 = tpu.matmul %13, %3, %cst_10 {dimension_numbers = #tpu.dot_dimension_numbers<[1], [0], [0], [1], [0, 0, 1, 1], [], []>} : vector<16x64xbf16>, vector<64x32xbf16>, vector<16x32xf32> -> vector<16x32xf32>
    %15 = vector.broadcast %6 : vector<1x32xf32> to vector<16x32xf32>
    %16 = arith.addf %14, %15 : vector<16x32xf32>
    %cst_11 = arith.constant 0.000000e+00 : f32
    %17 = vector.broadcast %cst_11 : f32 to vector<16x32xf32>
    %18 = arith.maximumf %16, %17 : vector<16x32xf32>
    %19 = arith.truncf %18 : vector<16x32xf32> to vector<16x32xbf16>
    %cst_12 = arith.constant dense<0.000000e+00> : vector<16x8xf32>
    %20 = tpu.matmul %19, %4, %cst_12 {dimension_numbers = #tpu.dot_dimension_numbers<[1], [0], [0], [1], [0, 0, 1, 1], [], []>} : vector<16x32xbf16>, vector<32x8xbf16>, vector<16x8xf32> -> vector<16x8xf32>
    %21 = vector.broadcast %7 : vector<1x8xf32> to vector<16x8xf32>
    %22 = arith.addf %20, %21 : vector<16x8xf32>
    %23 = tpu.transpose %22, [1, 0] : vector<16x8xf32> -> vector<8x16xf32>
    %24 = math.tanh %23 : vector<8x16xf32>
    %c0_13 = arith.constant 0 : index
    %c0_14 = arith.constant 0 : index
    %25 = vector.load %arg4[%c0_13, %c0_14] : memref<8x16xf32, #tpu.memory_space<vmem>>, vector<8x16xf32>
    tpu.vector_store %arg4[%c0_13, %c0_14], %24 {strides = array<i32>} : memref<8x16xf32, #tpu.memory_space<vmem>>, vector<8x16xf32>,
    return
  }
  func.func @transform_0(%arg0: i32) -> (i32, i32) {
    %c0_i32 = arith.constant 0 : i32
    %c0_i32_0 = arith.constant 0 : i32
    return %arg0, %c0_i32 : i32, i32
  }
  func.func @transform_1(%arg0: i32) -> (i32, i32) {
    %c0_i32 = arith.constant 0 : i32
    %c0_i32_0 = arith.constant 0 : i32
    %c0_i32_1 = arith.constant 0 : i32
    return %c0_i32, %c0_i32_0 : i32, i32
  }
  func.func @transform_2(%arg0: i32) -> (i32, i32) {
    %c0_i32 = arith.constant 0 : i32
    %c0_i32_0 = arith.constant 0 : i32
    %c0_i32_1 = arith.constant 0 : i32
    return %c0_i32, %c0_i32_0 : i32, i32
  }
  func.func @transform_3(%arg0: i32) -> (i32, i32) {
    %c0_i32 = arith.constant 0 : i32
    %c0_i32_0 = arith.constant 0 : i32
    return %c0_i32, %arg0 : i32, i32
  }
}

</mosaic_0001>

<llo_original>
// kernel: tpu_custom_call.1
$region0: #{tpu_custom_call.1}
  #allocation0 [shape = 'u32[]', space=smem, size = 0x4, offset = 0x4, fixed_abs, tag = 'smem constant byte address 0x4 - core index']
  #allocation1 [shape = 'u32[72,128]{1,0:T(1,128)}', space=vmem, size = 0x9000, scoped, tag = 'internal scratch']
  %s0 = inlined_call_operand.hbm [shape: f32[16,16], index: 0, kind: input, shape index: {}]
  %s1 = inlined_call_operand.hbm [shape: bf16[112,128], index: 1, kind: input, shape index: {}]
  %s2 = inlined_call_operand.hbm [shape: f32[1,384], index: 2, kind: input, shape index: {}]
  %s3 = inlined_call_operand.hbm [shape: f32[8,16], index: 3, kind: output, shape index: {}]
  %s4 = sld [smem:[#allocation0]]
  $region34: #{tpu_custom_call.1} parent=0
    _
  %s6 = ssub.s32 1, %s4
  %s7 = scalar_select 0, %s6, %s4
  $region1: #{tpu_custom_call.1} parent=0
    #allocation2 [shape = 'u8[8192]{0}', space=vmem, size = 0x2000, scoped, tag = 'input window, operand 0, single buffered']
    #allocation3 [shape = 's32[1]{0}', space=sflag, size = 0x4, scoped, tag = 'scoped memory for tpu_custom_call.1']
    #allocation4 [shape = 's32[1]{0}', space=sflag, size = 0x4, scoped, tag = 'scoped memory for tpu_custom_call.1']
    #allocation5 [shape = 'u8[28672]{0}', space=vmem, size = 0x7000, scoped, tag = 'input window, operand 1, single buffered']
    #allocation6 [shape = 's32[1]{0}', space=sflag, size = 0x4, scoped, tag = 'scoped memory for tpu_custom_call.1']
    #allocation7 [shape = 'u8[1536]{0}', space=vmem, size = 0x800, scoped, tag = 'input window, operand 2, single buffered']
    #allocation8 [shape = 'u8[4096]{0}', space=vmem, size = 0x1000, scoped, tag = 'output window, operand 0, single buffered']
    %8 = vsyncpa [#allocation3], 0
    %9 = vsyncpa [#allocation6], 0
    %10 = vsyncpa [#allocation4], 0
    // Predicated region
    $region2: #{tpu_custom_call.1} parent=1 // pred_check
      _
    $region3: #{tpu_custom_call.1} parent=1 // pred_check_branch
      %12 = sbr.rel (0) target = $region5
    $region4: #{tpu_custom_call.1} parent=1 // pred_region
      %14 = vsyncadd [#allocation3], 0
      %s15 = sshll.u32 %s0, 4
      %s16 = int_to_ptr.hbm [resolvable:$true] %s15
      %s17 = sshll.u32 [#allocation2], 4
      %s18 = int_to_ptr.vmem [resolvable:$true] %s17
      %23 = dma.hbm_to_vmem [thread:$0]  %s16, 256, %s18, [#allocation3], 128, 128, 8
    $region5: #{tpu_custom_call.1} parent=1 // pred_fallthru
      _
    // Predicated region
    $region6: #{tpu_custom_call.1} parent=1 // pred_check
      _
    $region7: #{tpu_custom_call.1} parent=1 // pred_check_branch
      %25 = sbr.rel (0) target = $region9
    $region8: #{tpu_custom_call.1} parent=1 // pred_region
      %27 = vsyncadd [#allocation6], 0
      %s28 = sshll.u32 %s1, 4
      %s29 = int_to_ptr.hbm [resolvable:$true] %s28
      %s30 = sshll.u32 [#allocation5], 4
      %s31 = int_to_ptr.vmem [resolvable:$true] %s30
      %36 = dma.hbm_to_vmem [thread:$0]  %s29, 896, %s31, [#allocation6], 64, 64, 4
    $region9: #{tpu_custom_call.1} parent=1 // pred_fallthru
      _
    // Predicated region
    $region10: #{tpu_custom_call.1} parent=1 // pred_check
      _
    $region11: #{tpu_custom_call.1} parent=1 // pred_check_branch
      %38 = sbr.rel (0) target = $region13
    $region12: #{tpu_custom_call.1} parent=1 // pred_region
      %40 = vsyncadd [#allocation6], 0
      %s42 = sshll.u32 %s2, 4
      %s43 = int_to_ptr.hbm [resolvable:$true] %s42
      %s44 = sshll.u32 [#allocation7], 4
      %s45 = int_to_ptr.vmem [resolvable:$true] %s44
      %47 = dma.hbm_to_vmem [thread:$0]  %s43, 48, %s45, [#allocation6]
    $region13: #{tpu_custom_call.1} parent=1 // pred_fallthru
      _
    // Predicated region
    $region14: #{tpu_custom_call.1} parent=1 // pred_check
      _
    $region15: #{tpu_custom_call.1} parent=1 // pred_check_branch
      %49 = sbr.rel (0) target = $region17
    $region16: #{tpu_custom_call.1} parent=1 // pred_region
      %51 = dma.done [#allocation3], 256
    $region17: #{tpu_custom_call.1} parent=1 // pred_fallthru
      _
    // Predicated region
    $region18: #{tpu_custom_call.1} parent=1 // pred_check
      _
    $region19: #{tpu_custom_call.1} parent=1 // pred_check_branch
      %53 = sbr.rel (0) target = $region21
    $region20: #{tpu_custom_call.1} parent=1 // pred_region
      %55 = dma.done [#allocation6], 896
    $region21: #{tpu_custom_call.1} parent=1 // pred_fallthru
      _
    // Predicated region
    $region22: #{tpu_custom_call.1} parent=1 // pred_check
      _
    $region23: #{tpu_custom_call.1} parent=1 // pred_check_branch
      %57 = sbr.rel (0) target = $region25
    $region24: #{tpu_custom_call.1} parent=1 // pred_region
      %59 = dma.done [#allocation6], 48
    $region25: #{tpu_custom_call.1} parent=1 // pred_fallthru
      _
    %v61 = vld [vmem:[#allocation2] sm:$0xff]
    %v62 = vld [vmem:[#allocation2 + $0x8] sm:$0xff]
    %v63 = vpack.c.bf16 %v62, %v61
    %v64 = vld [vmem:[#allocation5] sm:$0xf]
    %v65 = vld [vmem:[#allocation5 + $0x4] sm:$0xf]
    %v66 = vld [vmem:[#allocation5 + $0x8] sm:$0xf]
    %v67 = vld [vmem:[#allocation5 + $0xc] sm:$0xf]
    %v68 = vld [vmem:[#allocation5 + $0x10] sm:$0xf]
    %v69 = vld [vmem:[#allocation5 + $0x14] sm:$0xf]
    %v70 = vld [vmem:[#allocation5 + $0x18] sm:$0xf]
    %v71 = vld [vmem:[#allocation5 + $0x1c] sm:$0xf]
    %v72 = vld [vmem:[#allocation5 + $0x20] sm:$0xf]
    %v73 = vld [vmem:[#allocation5 + $0x24] sm:$0xf]
    %v74 = vld [vmem:[#allocation5 + $0x28] sm:$0xf]
    %v75 = vld [vmem:[#allocation5 + $0x2c] sm:$0xf]
    %v76 = vld [vmem:[#allocation5 + $0x30] sm:$0xf]
    %v77 = vld [vmem:[#allocation5 + $0x34] sm:$0xf]
    %v78 = vld [vmem:[#allocation7] sm:$0x1]
    %v79 = vld [vmem:[#allocation7 + $0x1] sm:$0x1]
    %v80 = vld [vmem:[#allocation7 + $0x2] sm:$0x1]
    %v82 = vperm.slane %v78, 0
    %v86 = vunpack.c.l.b16 %v64
    %v87 = vunpack.c.l.b16 %v65
    %v88 = vpack.c.b16 %v87, %v86
    %vm90 = vcmask 130048
    %v92 = vsel %vm90, %v63, 0
    %94 = vmatpush.bf16.msra.mxu0 0
    %95 = vmatpush.bf16.msra.mxu0 0
    %96 = vmatpush.bf16.msra.mxu0 0
    %97 = vmatpush.bf16.msra.mxu0 0
    %98 = vmatpush.bf16.msra.mxu0 0
    %99 = vmatpush.bf16.msra.mxu0 0
    %100 = vmatpush.bf16.msra.mxu0 0
    %101 = vmatpush.bf16.msra.mxu0 %v88
    %102 = vmatmul.bf16.gmra.mxu0 %v92
    %v103 = vpop.f32.mrf.mxu0
    %v104 = vadd.f32 %v82, %v103
    %v105 = vpop.f32.mrf.mxu0
    %v106 = vadd.f32 %v82, %v105
    %107 = vdwg.mxu0
    %v108 = vmax.f32 %v104, 0.0
    %v109 = vmax.f32 %v106, 0.0
    %v110 = vpack.c.bf16 %v109, %v108
    %v112 = vperm.slane %v79, 0
    %v122 = vunpack.c.l.b16 %v66
    %v123 = vunpack.c.l.b16 %v67
    %v124 = vunpack.c.l.b16 %v68
    %v125 = vunpack.c.l.b16 %v69
    %v126 = vunpack.c.l.b16 %v70
    %v127 = vunpack.c.l.b16 %v71
    %v128 = vunpack.c.l.b16 %v72
    %v129 = vunpack.c.l.b16 %v73
    %v130 = vpack.c.b16 %v123, %v122
    %v131 = vpack.c.b16 %v125, %v124
    %v132 = vpack.c.b16 %v127, %v126
    %v133 = vpack.c.b16 %v129, %v128
    %vm138 = vcmask 523264
    %v140 = vsel %vm138, %v110, 0
    %142 = vmatpush.bf16.msra.mxu0 0
    %143 = vmatpush.bf16.msra.mxu0 0
    %144 = vmatpush.bf16.msra.mxu0 0
    %145 = vmatpush.bf16.msra.mxu0 0
    %146 = vmatpush.bf16.msra.mxu0 %v133
    %147 = vmatpush.bf16.msra.mxu0 %v132
    %148 = vmatpush.bf16.msra.mxu0 %v131
    %149 = vmatpush.bf16.msra.mxu0 %v130
    %150 = vmatmul.bf16.gmra.mxu0 %v140
    %v151 = vpop.f32.mrf.mxu0
    %v152 = vadd.f32 %v112, %v151
    %v153 = vpop.f32.mrf.mxu0
    %v154 = vadd.f32 %v112, %v153
    %155 = vdwg.mxu0
    %v156 = vmax.f32 %v152, 0.0
    %v157 = vmax.f32 %v154, 0.0
    %v158 = vpack.c.bf16 %v157, %v156
    %v160 = vperm.slane %v80, 0
    %v166 = vunpack.c.l.b16 %v74
    %v167 = vunpack.c.l.b16 %v75
    %v168 = vunpack.c.l.b16 %v76
    %v169 = vunpack.c.l.b16 %v77
    %v170 = vpack.c.b16 %v167, %v166
    %v171 = vpack.c.b16 %v169, %v168
    %vm174 = vcmask 261120
    %v176 = vsel %vm174, %v158, 0
    %178 = vmatpush.bf16.msra.mxu0 0
    %179 = vmatpush.bf16.msra.mxu0 0
    %180 = vmatpush.bf16.msra.mxu0 0
    %181 = vmatpush.bf16.msra.mxu0 0
    %182 = vmatpush.bf16.msra.mxu0 0
    %183 = vmatpush.bf16.msra.mxu0 0
    %184 = vmatpush.bf16.msra.mxu0 %v171
    %185 = vmatpush.bf16.msra.mxu0 %v170
    %186 = vmatmul.bf16.gmra.mxu0 %v176
    %v187 = vpop.f32.mrf.mxu0
    %v188 = vadd.f32 %v160, %v187
    %v189 = vpop.f32.mrf.mxu0
    %v190 = vadd.f32 %v160, %v189
    %191 = vdwg.mxu0
    %192 = vxpose.xlu0.b32.start [1/16] %v188, 128
    %193 = vxpose.xlu0.b32.cont [2/16] %v190, 128
    %194 = vxpose.xlu0.b32.cont [3/16] 0.0, 128
    %195 = vxpose.xlu0.b32.cont [4/16] 0.0, 128
    %196 = vxpose.xlu0.b32.cont [5/16] 0.0, 128
    %197 = vxpose.xlu0.b32.cont [6/16] 0.0, 128
    %198 = vxpose.xlu0.b32.cont [7/16] 0.0, 128
    %199 = vxpose.xlu0.b32.cont [8/16] 0.0, 128
    %200 = vxpose.xlu0.b32.cont [9/16] 0.0, 128
    %201 = vxpose.xlu0.b32.cont [10/16] 0.0, 128
    %202 = vxpose.xlu0.b32.cont [11/16] 0.0, 128
    %203 = vxpose.xlu0.b32.cont [12/16] 0.0, 128
    %204 = vxpose.xlu0.b32.cont [13/16] 0.0, 128
    %205 = vxpose.xlu0.b32.cont [14/16] 0.0, 128
    %206 = vxpose.xlu0.b32.cont [15/16] 0.0, 128
    %207 = vxpose.xlu0.b32.end [16/16] 0.0, 128
    %v208 = vpop.trf.xlu0
    %v209 = vpop.trf.xlu0
    %v210 = vpop.trf.xlu0
    %v211 = vpop.trf.xlu0
    %v212 = vpop.trf.xlu0
    %v213 = vpop.trf.xlu0
    %v214 = vpop.trf.xlu0
    %v215 = vpop.trf.xlu0
    %v216 = vpop.trf.xlu0
    %v217 = vpop.trf.xlu0
    %v218 = vpop.trf.xlu0
    %v219 = vpop.trf.xlu0
    %v220 = vpop.trf.xlu0
    %v221 = vpop.trf.xlu0
    %v222 = vpop.trf.xlu0
    %v223 = vpop.trf.xlu0
    %v224 = vtanh.pop %v208
    %225 = vst.msk [vmem:[#allocation8] sm:$0xff] %vm90, %v224
    // Predicated region
    $region26: #{tpu_custom_call.1} parent=1 // pred_check
      _
    $region27: #{tpu_custom_call.1} parent=1 // pred_check_branch
      %227 = sbr.rel (0) target = $region29
    $region28: #{tpu_custom_call.1} parent=1 // pred_region
      %229 = vsyncadd [#allocation4], 0
      %s231 = sshll.u32 [#allocation8], 4
      %s232 = int_to_ptr.vmem [resolvable:$true] %s231
      %s233 = sshll.u32 %s3, 4
      %s234 = int_to_ptr.hbm [resolvable:$true] %s233
      %236 = dma.vmem_to_hbm [thread:$0]  %s232, 128, %s234, [#allocation4]
    $region29: #{tpu_custom_call.1} parent=1 // pred_fallthru
      _
    // Predicated region
    $region30: #{tpu_custom_call.1} parent=1 // pred_check
      _
    $region31: #{tpu_custom_call.1} parent=1 // pred_check_branch
      %238 = sbr.rel (0) target = $region33
    $region32: #{tpu_custom_call.1} parent=1 // pred_region
      %240 = dma.done [#allocation4], 128
    $region33: #{tpu_custom_call.1} parent=1 // pred_fallthru
      _
    %241 = vsyncpa [#allocation3], 1
    %242 = vsyncpa [#allocation6], 1
    %243 = vsyncpa [#allocation4], 1

</llo_original>
